<compile_context>
chip_gen: v7x
topology: tpu7x:2x2x1
jax: 0.10.0
libtpu: 0.0.40
codegen_flags: <defaults>
</compile_context>

<pallas_src>
import functools
import math

import jax
import jax.numpy as jnp
from jax.experimental import pallas as pl
from jax.experimental.pallas import tpu as pltpu

LANES = 128
MAX_BLOCK_ROWS = 2048  # (2048, 128) f32 = 1 MiB per stream per grid step


def _focus_term(one_minus_pt, gamma):
    """(1 - pt) ** gamma with an integer-gamma fast path (no pow -> exp/log)."""
    g = float(gamma)
    if g == 0.0:
        return jnp.ones_like(one_minus_pt)
    if g.is_integer() and 0 < g <= 8:
        r = one_minus_pt
        for _ in range(int(g) - 1):
            r = r * one_minus_pt
        return r
    # Non-integer gamma: clamp so pt rounding a hair above 1.0 can't give NaN.
    return jnp.power(jnp.maximum(one_minus_pt, 0.0), g)


def _focal_elementwise(x_raw, t_raw, gamma):
    x = x_raw.astype(jnp.float32)
    t = t_raw.astype(jnp.float32)
    # Numerically stable BCE with logits (matches torch's
    # binary_cross_entropy_with_logits): max(x,0) - x*t + log1p(exp(-|x|))
    bce = jnp.maximum(x, 0.0) - x * t + jnp.log1p(jnp.exp(-jnp.abs(x)))
    pt = jnp.exp(-bce)
    return _focus_term(1.0 - pt, gamma) * bce


def _focal_sum_kernel(x_ref, t_ref, out_ref, acc_ref, *, gamma, n_valid,
                      block_rows, steps_per_core, needs_mask):
    c = pl.program_id(0)
    i = pl.program_id(1)

    @pl.when(i == 0)
    def _():
        acc_ref[...] = jnp.zeros_like(acc_ref)

    focal = _focal_elementwise(x_ref[...], t_ref[...], gamma)

    if needs_mask:
        block_elems = block_rows * LANES
        full_blocks = n_valid // block_elems  # blocks that are fully valid
        gstep = c * steps_per_core + i

        @pl.when(gstep < full_blocks)
        def _():
            # Fully-valid block: mask-free VPU add.
            acc_ref[...] += focal

        @pl.when(gstep >= full_blocks)
        def _():
            # Tail block (partial) or clamped duplicate block from an uneven
            # 2-core split: zero the out-of-range contributions.
            base = gstep * block_elems
            row = jax.lax.broadcasted_iota(jnp.int32, focal.shape, 0)
            lane = jax.lax.broadcasted_iota(jnp.int32, focal.shape, 1)
            idx = base + row * LANES + lane
            acc_ref[...] += jnp.where(idx < n_valid, focal, 0.0)
    else:
        acc_ref[...] += focal  # pure VPU adds in the hot loop

    @pl.when(i == pl.num_programs(1) - 1)
    def _():
        out_ref[0, 0] = jnp.sum(acc_ref[...])  # one cross-lane reduce per core


def _focal_none_kernel(x_ref, t_ref, o_ref, *, alpha, gamma):
    focal = _focal_elementwise(x_ref[...], t_ref[...], gamma)
    if float(alpha) != 1.0:
        focal = focal * jnp.float32(alpha)
    o_ref[...] = focal.astype(o_ref.dtype)


def _to_slab(a, padded_total):
    """Flatten to 1D (native dtype) and reshape to (rows, 128).

    No copy when the element count is already a multiple of 128 (the usual
    NCHW case); otherwise a minimal pad to the next multiple of 128.
    """
    flat = a.reshape(-1)
    n = flat.shape[0]
    if padded_total != n:
        flat = jnp.pad(flat, (0, padded_total - n))
    return flat.reshape(padded_total // LANES, LANES)


def focal_loss(inputs, targets, alpha=1.0, gamma=2.0, reduction="mean"):
    """Pallas TPU implementation of FocalLoss.forward (elementwise, any shape)."""
    orig_shape = inputs.shape
    n_valid = int(math.prod(orig_shape))
    padded_total = pl.cdiv(n_valid, LANES) * LANES
    rows = padded_total // LANES

    x2d = _to_slab(inputs, padded_total)   # native dtype; kernel upcasts
    t2d = _to_slab(targets, padded_total)

    block_rows = rows if rows <= MAX_BLOCK_ROWS else MAX_BLOCK_ROWS
    steps = pl.cdiv(rows, block_rows)

    if reduction in ("mean", "sum"):
        # Split the streaming reduction across 2 TensorCores (v7x); a size-1
        # parallel axis costs nothing on single-core v5e/v6e.
        num_cores = 2 if steps >= 2 else 1
        steps_per_core = pl.cdiv(steps, num_cores)
        workspace = num_cores * steps_per_core * block_rows * LANES
        needs_mask = workspace != n_valid

        def in_map(c, i):
            # Clamp so an uneven core split never indexes past the last block;
            # the in-kernel mask zeroes the duplicate contribution.
            return (jnp.minimum(c * steps_per_core + i, steps - 1), 0)

        in_spec = pl.BlockSpec((block_rows, LANES), in_map)
        kernel = functools.partial(
            _focal_sum_kernel, gamma=float(gamma), n_valid=n_valid,
            block_rows=block_rows, steps_per_core=steps_per_core,
            needs_mask=needs_mask)

        partials = pl.pallas_call(
            kernel,
            out_shape=jax.ShapeDtypeStruct((num_cores, 1), jnp.float32),
            grid_spec=pltpu.PrefetchScalarGridSpec(
                num_scalar_prefetch=0,
                grid=(num_cores, steps_per_core),
                in_specs=[in_spec, in_spec],
                out_specs=pl.BlockSpec((1, 1), lambda c, i: (c, 0),
                                       memory_space=pltpu.SMEM),
                scratch_shapes=[pltpu.VMEM((block_rows, LANES), jnp.float32)],
            ),
            compiler_params=pltpu.CompilerParams(
                dimension_semantics=("parallel", "arbitrary")),
        )(x2d, t2d)

        total = jnp.sum(partials) * jnp.float32(alpha)  # alpha hoisted
        if reduction == "mean":
            return total / jnp.float32(n_valid)
        return total

    # reduction == 'none'
    out_dtype = (inputs.dtype if jnp.issubdtype(inputs.dtype, jnp.floating)
                 else jnp.float32)
    spec = pl.BlockSpec((block_rows, LANES), lambda i: (i, 0))
    kernel = functools.partial(_focal_none_kernel,
                               alpha=float(alpha), gamma=float(gamma))
    out2d = pl.pallas_call(
        kernel,
        out_shape=jax.ShapeDtypeStruct((rows, LANES), out_dtype),
        grid_spec=pltpu.PrefetchScalarGridSpec(
            num_scalar_prefetch=0,
            grid=(steps,),
            in_specs=[spec, spec],
            out_specs=spec,
        ),
        compiler_params=pltpu.CompilerParams(
            dimension_semantics=("parallel",)),
    )(x2d, t2d)

    out_flat = out2d.reshape(-1)
    if padded_total != n_valid:
        out_flat = out_flat[:n_valid]
    return out_flat.reshape(orig_shape)


def _reference_focal_loss(inputs, targets, alpha=1.0, gamma=2.0, reduction="mean"):
    x = inputs.astype(jnp.float32)
    t = targets.astype(jnp.float32)
    bce = jnp.maximum(x, 0.0) - x * t + jnp.log1p(jnp.exp(-jnp.abs(x)))
    pt = jnp.exp(-bce)
    focal = alpha * (1.0 - pt) ** gamma * bce
    if reduction == "mean":
        return focal.mean()
    elif reduction == "sum":
        return focal.sum()
    return focal


if __name__ == "__main__":
    key = jax.random.PRNGKey(0)
    k1, k2 = jax.random.split(key)

    N, C, H, W = 2, 4, 16, 16  # NCHW, as in the PyTorch module docstring
    inputs = jax.random.normal(k1, (N, C, H, W), dtype=jnp.float32)   # logits
    targets = (jax.random.uniform(k2, (N, C, H, W)) > 0.5).astype(jnp.float32)

    # Module defaults: alpha=1, gamma=2, reduction='mean'
    loss = focal_loss(inputs, targets, alpha=1.0, gamma=2.0, reduction="mean")
    loss = jax.block_until_ready(loss)
    ref = _reference_focal_loss(inputs, targets, 1.0, 2.0, "mean")
    assert jnp.allclose(loss, ref, rtol=1e-5, atol=1e-6), (loss, ref)

    # 'sum' reduction
    s = jax.block_until_ready(focal_loss(inputs, targets, reduction="sum"))
    s_ref = _reference_focal_loss(inputs, targets, 1.0, 2.0, "sum")
    assert jnp.allclose(s, s_ref, rtol=1e-5, atol=1e-4), (s, s_ref)

    # 'none' reduction
    e = jax.block_until_ready(focal_loss(inputs, targets, reduction="none"))
    e_ref = _reference_focal_loss(inputs, targets, 1.0, 2.0, "none")
    assert e.shape == e_ref.shape
    assert jnp.allclose(e, e_ref, rtol=1e-5, atol=1e-6)

    # Ragged (non-128-aligned) shape exercises the in-kernel tail mask.
    xr = jax.random.normal(k1, (3, 5, 7), dtype=jnp.float32)
    tr = (jax.random.uniform(k2, (3, 5, 7)) > 0.5).astype(jnp.float32)
    m = jax.block_until_ready(focal_loss(xr, tr, alpha=0.25, gamma=2.0,
                                         reduction="mean"))
    m_ref = _reference_focal_loss(xr, tr, 0.25, 2.0, "mean")
    assert jnp.allclose(m, m_ref, rtol=1e-5, atol=1e-6), (m, m_ref)

    print("KERNEL_OK")
</pallas_src>

<mosaic_0001>
module attributes {stable_mosaic.version = 11 : i64} {
  func.func @_focal_sum_kernel(%arg0: i32, %arg1: i32, %arg2: memref<16x128xf32, #tpu.memory_space<vmem>>, %arg3: memref<16x128xf32, #tpu.memory_space<vmem>>, %arg4: memref<1x1xf32, #tpu.memory_space<smem>>, %arg5: memref<16x128xf32, #tpu.memory_space<vmem>>) attributes {dimension_semantics = [#tpu.dimension_semantics<parallel>, #tpu.dimension_semantics<arbitrary>], iteration_bounds = array<i64: 1, 1>, scalar_prefetch = 0 : i64, scratch_operands = 1 : i64, tpu.core_type = #tpu.core_type<tc>, window_params = [{transform_indices = @transform_0, window_bounds = array<i64: 16, 128>}, {transform_indices = @transform_1, window_bounds = array<i64: 16, 128>}, {transform_indices = @transform_2, window_bounds = array<i64: 1, 1>}]} {
    %c0_i32 = arith.constant 0 : i32
    %0 = arith.cmpi eq, %arg1, %c0_i32 : i32
    %1 = arith.extui %0 : i1 to i32
    %c0_i32_0 = arith.constant 0 : i32
    %2 = arith.cmpi ne, %1, %c0_i32_0 : i32
    scf.if %2 {
      %cst_13 = arith.constant 0.000000e+00 : f32
      %28 = vector.broadcast %cst_13 : f32 to vector<16x128xf32>
      %c0_14 = arith.constant 0 : index
      %c0_15 = arith.constant 0 : index
      %29 = vector.load %arg5[%c0_14, %c0_15] : memref<16x128xf32, #tpu.memory_space<vmem>>, vector<16x128xf32>
      tpu.vector_store %arg5[%c0_14, %c0_15], %28 {strides = array<i32>} : memref<16x128xf32, #tpu.memory_space<vmem>>, vector<16x128xf32>,
    } else {
    }
    %c0 = arith.constant 0 : index
    %c0_1 = arith.constant 0 : index
    %3 = vector.load %arg2[%c0, %c0_1] : memref<16x128xf32, #tpu.memory_space<vmem>>, vector<16x128xf32>
    %c0_2 = arith.constant 0 : index
    %c0_3 = arith.constant 0 : index
    %4 = vector.load %arg3[%c0_2, %c0_3] : memref<16x128xf32, #tpu.memory_space<vmem>>, vector<16x128xf32>
    %cst = arith.constant 0.000000e+00 : f32
    %5 = vector.broadcast %cst : f32 to vector<16x128xf32>
    %6 = arith.maximumf %3, %5 : vector<16x128xf32>
    %7 = arith.mulf %3, %4 : vector<16x128xf32>
    %8 = arith.subf %6, %7 : vector<16x128xf32>
    %9 = math.absf %3 : vector<16x128xf32>
    %cst_4 = arith.constant 0.000000e+00 : f32
    %10 = vector.broadcast %cst_4 : f32 to vector<16x128xf32>
    %11 = arith.subf %10, %9 : vector<16x128xf32>
    %12 = math.exp %11 : vector<16x128xf32>
    %13 = math.log1p %12 : vector<16x128xf32>
    %14 = arith.addf %8, %13 : vector<16x128xf32>
    %cst_5 = arith.constant 0.000000e+00 : f32
    %15 = vector.broadcast %cst_5 : f32 to vector<16x128xf32>
    %16 = arith.subf %15, %14 : vector<16x128xf32>
    %17 = math.exp %16 : vector<16x128xf32>
    %cst_6 = arith.constant 1.000000e+00 : f32
    %18 = vector.broadcast %cst_6 : f32 to vector<16x128xf32>
    %19 = arith.subf %18, %17 : vector<16x128xf32>
    %20 = arith.mulf %19, %19 : vector<16x128xf32>
    %21 = arith.mulf %20, %14 : vector<16x128xf32>
    %c0_7 = arith.constant 0 : index
    %c0_8 = arith.constant 0 : index
    %22 = vector.load %arg5[%c0_7, %c0_8] : memref<16x128xf32, #tpu.memory_space<vmem>>, vector<16x128xf32>
    %23 = arith.addf %22, %21 : vector<16x128xf32>
    %c0_9 = arith.constant 0 : index
    %c0_10 = arith.constant 0 : index
    %24 = vector.load %arg5[%c0_9, %c0_10] : memref<16x128xf32, #tpu.memory_space<vmem>>, vector<16x128xf32>
    tpu.vector_store %arg5[%c0_9, %c0_10], %23 {strides = array<i32>} : memref<16x128xf32, #tpu.memory_space<vmem>>, vector<16x128xf32>,
    %c0_i32_11 = arith.constant 0 : i32
    %25 = arith.cmpi eq, %arg1, %c0_i32_11 : i32
    %26 = arith.extui %25 : i1 to i32
    %c0_i32_12 = arith.constant 0 : i32
    %27 = arith.cmpi ne, %26, %c0_i32_12 : i32
    scf.if %27 {
      %c0_13 = arith.constant 0 : index
      %c0_14 = arith.constant 0 : index
      %28 = vector.load %arg5[%c0_13, %c0_14] : memref<16x128xf32, #tpu.memory_space<vmem>>, vector<16x128xf32>
      %29 = vector.shape_cast %28 : vector<16x128xf32> to vector<1x16x128xf32>
      %cst_15 = arith.constant dense<0.000000e+00> : vector<1xf32>
      %30 = vector.multi_reduction <add>, %29, %cst_15 [1, 2] : vector<1x16x128xf32> to vector<1xf32>
      %31 = vector.shape_cast %30 : vector<1xf32> to vector<1x1x1xf32>
      %32 = vector.extract %31[0, 0, 0] : f32 from vector<1x1x1xf32>
      %c0_16 = arith.constant 0 : index
      %c0_17 = arith.constant 0 : index
      %33 = memref.load %arg4[%c0_16, %c0_17] : memref<1x1xf32, #tpu.memory_space<smem>>
      memref.store %32, %arg4[%c0_16, %c0_17] : memref<1x1xf32, #tpu.memory_space<smem>>
    } else {
    }
    return
  }
  func.func @transform_0(%arg0: i32, %arg1: i32) -> (i32, i32) {
    %c1_i32 = arith.constant 1 : i32
    %0 = arith.muli %arg0, %c1_i32 : i32
    %1 = arith.addi %0, %arg1 : i32
    %c0_i32 = arith.constant 0 : i32
    %2 = arith.minsi %1, %c0_i32 : i32
    %c0_i32_0 = arith.constant 0 : i32
    %c0_i32_1 = arith.constant 0 : i32
    return %2, %c0_i32_0 : i32, i32
  }
  func.func @transform_1(%arg0: i32, %arg1: i32) -> (i32, i32) {
    %c1_i32 = arith.constant 1 : i32
    %0 = arith.muli %arg0, %c1_i32 : i32
    %1 = arith.addi %0, %arg1 : i32
    %c0_i32 = arith.constant 0 : i32
    %2 = arith.minsi %1, %c0_i32 : i32
    %c0_i32_0 = arith.constant 0 : i32
    %c0_i32_1 = arith.constant 0 : i32
    return %2, %c0_i32_0 : i32, i32
  }
  func.func @transform_2(%arg0: i32, %arg1: i32) -> (i32, i32) {
    %c0_i32 = arith.constant 0 : i32
    %c0_i32_0 = arith.constant 0 : i32
    return %arg0, %c0_i32 : i32, i32
  }
}

</mosaic_0001>

<llo_original>
// kernel: tpu_custom_call.1
$region0: #{tpu_custom_call.1}
  #allocation0 [shape = 'u32[]', space=smem, size = 0x4, offset = 0x4, fixed_abs, tag = 'smem constant byte address 0x4 - core index']
  #allocation1 [shape = 'u32[144,128]{1,0:T(1,128)}', space=vmem, size = 0x12000, scoped, tag = 'internal scratch']
  #allocation2 [shape = 'f32[16,128]{1,0:T(8,128)}', space=vmem, size = 0x2000, scoped, tag = 'scratch operand']
  %s0 = inlined_call_operand.hbm [shape: f32[16,128], index: 0, kind: input, shape index: {}]
  %s1 = inlined_call_operand.hbm [shape: f32[16,128], index: 1, kind: input, shape index: {}]
  %s2 = inlined_call_operand.hbm [shape: f32[1,1], index: 2, kind: output, shape index: {}]
  %s3 = sld [smem:[#allocation0]]
  $region34: #{tpu_custom_call.1} parent=0
    _
  %s5 = ssub.s32 1, %s3
  %s6 = scalar_select 0, %s5, %s3
  $region1: #{tpu_custom_call.1} parent=0
    #allocation3 [shape = 'u8[8192]{0}', space=vmem, size = 0x2000, scoped, tag = 'input window, operand 0, single buffered']
    #allocation4 [shape = 's32[1]{0}', space=sflag, size = 0x4, scoped, tag = 'scoped memory for tpu_custom_call.1']
    #allocation5 [shape = 's32[1]{0}', space=sflag, size = 0x4, scoped, tag = 'scoped memory for tpu_custom_call.1']
    #allocation6 [shape = 'u8[8192]{0}', space=vmem, size = 0x2000, scoped, tag = 'input window, operand 1, single buffered']
    #allocation7 [shape = 's32[1]{0}', space=sflag, size = 0x4, scoped, tag = 'scoped memory for tpu_custom_call.1']
    #allocation8 [shape = 'u8[512]{0}', space=smem, size = 0x200, scoped, tag = 'output window, operand 0, single buffered']
    %7 = vsyncpa [#allocation4], 0
    %8 = vsyncpa [#allocation7], 0
    %9 = vsyncpa [#allocation5], 0
    // Predicated region
    $region2: #{tpu_custom_call.1} parent=1 // pred_check
      _
    $region3: #{tpu_custom_call.1} parent=1 // pred_check_branch
      %11 = sbr.rel (0) target = $region5
    $region4: #{tpu_custom_call.1} parent=1 // pred_region
      %s12 = sadd.s32 0, 0
      %p13 = scmp.lt.s32.totalorder %s12, 0
      %s14 = scalar_select %p13, %s12, 0
      %s15 = smul.u32 2, %s14
      %s17 = ssub.s32 256, 256
      %18 = vsyncadd [#allocation4], %s17
      %s19 = smul.addr %s15, 128
      %s20 = scalar_lea.hbm %s0, %s19
      %s21 = sshll.u32 [#allocation3], 4
      %s22 = int_to_ptr.vmem [resolvable:$true] %s21
      %27 = dma.hbm_to_vmem [thread:$0]  %s20, 256, %s22, [#allocation4], 128, 128, 8
    $region5: #{tpu_custom_call.1} parent=1 // pred_fallthru
      _
    // Predicated region
    $region6: #{tpu_custom_call.1} parent=1 // pred_check
      _
    $region7: #{tpu_custom_call.1} parent=1 // pred_check_branch
      %29 = sbr.rel (0) target = $region9
    $region8: #{tpu_custom_call.1} parent=1 // pred_region
      %s30 = sadd.s32 0, 0
      %p31 = scmp.lt.s32.totalorder %s30, 0
      %s32 = scalar_select %p31, %s30, 0
      %s33 = smul.u32 2, %s32
      %s35 = ssub.s32 256, 256
      %36 = vsyncadd [#allocation7], %s35
      %s37 = smul.addr %s33, 128
      %s38 = scalar_lea.hbm %s1, %s37
      %s39 = sshll.u32 [#allocation6], 4
      %s40 = int_to_ptr.vmem [resolvable:$true] %s39
      %45 = dma.hbm_to_vmem [thread:$0]  %s38, 256, %s40, [#allocation7], 128, 128, 8
    $region9: #{tpu_custom_call.1} parent=1 // pred_fallthru
      _
    // Predicated region
    $region10: #{tpu_custom_call.1} parent=1 // pred_check
      _
    $region11: #{tpu_custom_call.1} parent=1 // pred_check_branch
      %47 = sbr.rel (0) target = $region13
    $region12: #{tpu_custom_call.1} parent=1 // pred_region
      %48 = dma.done [#allocation4], 256
    $region13: #{tpu_custom_call.1} parent=1 // pred_fallthru
      _
    // Predicated region
    $region14: #{tpu_custom_call.1} parent=1 // pred_check
      _
    $region15: #{tpu_custom_call.1} parent=1 // pred_check_branch
      %50 = sbr.rel (0) target = $region17
    $region16: #{tpu_custom_call.1} parent=1 // pred_region
      %51 = dma.done [#allocation7], 256
    $region17: #{tpu_custom_call.1} parent=1 // pred_fallthru
      _
    %s52 = sadd.s32 0, 0
    %p53 = scmp.lt.s32.totalorder %s52, 0
    %s54 = scalar_select %p53, %s52, 0
    %s55 = smul.u32 2, %s54
    %s56 = sadd.s32 0, 0
    %p57 = scmp.lt.s32.totalorder %s56, 0
    %s58 = scalar_select %p57, %s56, 0
    %s59 = smul.u32 2, %s58
    %p60 = scmp.eq.s32.totalorder 0, 0
    // Predicated region
    $region18: #{tpu_custom_call.1} parent=1 // pred_check
      %p61 = pneg %p60
    $region19: #{tpu_custom_call.1} parent=1 // pred_check_branch
      %63 = sbr.rel (%p61) target = $region21
    $region20: #{tpu_custom_call.1} parent=1 // pred_region
      %64 = vst [vmem:[#allocation2] sm:$0xff] 0.0
      %65 = vst [vmem:[#allocation2 + $0x8] sm:$0xff] 0.0
    $region21: #{tpu_custom_call.1} parent=1 // pred_fallthru
      _
    %v66 = vld [vmem:[#allocation3] sm:$0xff]
    %v67 = vld [vmem:[#allocation3 + $0x8] sm:$0xff]
    %v68 = vld [vmem:[#allocation6] sm:$0xff]
    %v69 = vld [vmem:[#allocation6 + $0x8] sm:$0xff]
    %v70 = vmax.f32 %v66, 0.0
    %v71 = vmax.f32 %v67, 0.0
    %v72 = vmul.f32 %v66, %v68
    %v73 = vmul.f32 %v67, %v69
    %v74 = vsub.f32 %v70, %v72
    %v75 = vsub.f32 %v71, %v73
    %v76 = vand.u32 2147483647, %v66
    %v77 = vand.u32 2147483647, %v67
    %v78 = vsub.f32 0.0, %v76
    %v79 = vsub.f32 0.0, %v77
    %v80 = vmul.f32 %v78, 1.442695
    %v81 = vpow.pop %v80
    %v82 = vmul.f32 %v79, 1.442695
    %v83 = vpow.pop %v82
    %v84 = vadd.f32 %v81, 1.0
    %v85 = vlog2.pop %v84
    %v86 = vmul.f32 %v85, 0.6931472
    %v87 = vmul.f32 -0.5, %v81
    %v88 = vadd.f32 %v87, 1.0
    %v89 = vmul.f32 %v88, %v81
    %v90 = vand.u32 2147483647, %v81
    %vm91 = vcmp.lt.f32.partialorder %v90, 0.0004427343
    %v92 = vsel %vm91, %v89, %v86
    %v93 = vadd.f32 %v83, 1.0
    %v94 = vlog2.pop %v93
    %v95 = vmul.f32 %v94, 0.6931472
    %v96 = vmul.f32 -0.5, %v83
    %v97 = vadd.f32 %v96, 1.0
    %v98 = vmul.f32 %v97, %v83
    %v99 = vand.u32 2147483647, %v83
    %vm100 = vcmp.lt.f32.partialorder %v99, 0.0004427343
    %v101 = vsel %vm100, %v98, %v95
    %v102 = vadd.f32 %v74, %v92
    %v103 = vadd.f32 %v75, %v101
    %v104 = vsub.f32 0.0, %v102
    %v105 = vsub.f32 0.0, %v103
    %v106 = vmul.f32 %v104, 1.442695
    %v107 = vpow.pop %v106
    %v108 = vmul.f32 %v105, 1.442695
    %v109 = vpow.pop %v108
    %v110 = vsub.f32 1.0, %v107
    %v111 = vsub.f32 1.0, %v109
    %v112 = vmul.f32 %v110, %v110
    %v113 = vmul.f32 %v111, %v111
    %v114 = vmul.f32 %v112, %v102
    %v115 = vmul.f32 %v113, %v103
    %v116 = vld [vmem:[#allocation2] sm:$0xff]
    %v117 = vld [vmem:[#allocation2 + $0x8] sm:$0xff]
    %v118 = vadd.f32 %v116, %v114
    %v119 = vadd.f32 %v117, %v115
    %120 = vst [vmem:[#allocation2] sm:$0xff] %v118
    %121 = vst [vmem:[#allocation2 + $0x8] sm:$0xff] %v119
    // Predicated region
    $region22: #{tpu_custom_call.1} parent=1 // pred_check
      %p122 = pneg %p60
    $region23: #{tpu_custom_call.1} parent=1 // pred_check_branch
      %124 = sbr.rel (%p122) target = $region25
    $region24: #{tpu_custom_call.1} parent=1 // pred_region
      %v125 = vld [vmem:[#allocation2] sm:$0xff]
      %v126 = vld [vmem:[#allocation2 + $0x8] sm:$0xff]
      %v127 = vadd.f32 %v125, %v126
      %128 = vadd.xlane.f32.xlu0 %v127
      %v129 = vpop.xlane.xlu0 %128
      %v130 = vrot.slane %v129, 4
      %v131 = vadd.f32 %v129, %v130
      %v132 = vrot.slane %v131, 2
      %v133 = vadd.f32 %v131, %v132
      %v134 = vrot.slane %v133, 1
      %v135 = vadd.f32 %v133, %v134
      %s136 = vtos %v135
      %s137 = scalar_lea.smem [#allocation8], 0
      %138 = sst [smem:[%s137]] %s136
    $region25: #{tpu_custom_call.1} parent=1 // pred_fallthru
      _
    // Predicated region
    $region26: #{tpu_custom_call.1} parent=1 // pred_check
      _
    $region27: #{tpu_custom_call.1} parent=1 // pred_check_branch
      %140 = sbr.rel (0) target = $region29
    $region28: #{tpu_custom_call.1} parent=1 // pred_region
      %s142 = ssub.s32 16, 16
      %143 = vsyncadd [#allocation5], %s142
      %146 = dma.smem_to_hbm [#allocation8], 16, %s2, [#allocation5]
    $region29: #{tpu_custom_call.1} parent=1 // pred_fallthru
      _
    // Predicated region
    $region30: #{tpu_custom_call.1} parent=1 // pred_check
      _
    $region31: #{tpu_custom_call.1} parent=1 // pred_check_branch
      %148 = sbr.rel (0) target = $region33
    $region32: #{tpu_custom_call.1} parent=1 // pred_region
      %149 = dma.done [#allocation5], 16
    $region33: #{tpu_custom_call.1} parent=1 // pred_fallthru
      _
    %150 = sfence
    %151 = vsyncpa [#allocation4], 1
    %152 = vsyncpa [#allocation7], 1
    %153 = vsyncpa [#allocation5], 1

</llo_original>
